<compile_context>
chip_gen: v7x
topology: tpu7x:2x2x1
jax: 0.10.0
libtpu: 0.0.40
codegen_flags: <defaults>
</compile_context>

<pallas_src>
import functools
import math

import jax
import jax.numpy as jnp
from jax.experimental import pallas as pl
from jax.experimental.pallas import tpu as pltpu

ACT_DTYPE = jnp.bfloat16            # feature maps in HBM
EPS = 1e-5                          # nn.InstanceNorm3d default


def _vmem_limit_bytes():
    """Generation-aware VMEM budget (~0.6x physical), with a safe fallback."""
    try:
        return int(pltpu.get_tpu_info().vmem_capacity_bytes * 0.6)
    except Exception:
        return 48 * 1024 * 1024


VMEM_LIMIT = _vmem_limit_bytes()


def _dot_nt(a, b):
    """a @ b.T (contract last dims) with bf16 MXU inputs and f32 accumulation."""
    return jax.lax.dot_general(
        a.astype(jnp.bfloat16), b.astype(jnp.bfloat16),
        (((a.ndim - 1,), (b.ndim - 1,)), ((), ())),
        preferred_element_type=jnp.float32)


# ----------------------------------------------------------------------------
# Conv3D kernel: rolling depth-slab ring buffer (manual DMA) + fused input
# InstanceNorm/ReLU + per-kd tap matmuls + fused output InstanceNorm statistics
# ----------------------------------------------------------------------------

def _conv3d_kernel(x_hbm, insc_ref, insh_ref, w_ref, b_ref,
                   y_ref, sum_ref, sq_ref, buf, sems,
                   *, k, D, H, W, Cin, Cout, fuse_in):
    b = pl.program_id(0)
    d = pl.program_id(1)
    pad = k // 2
    nslots = k + 1
    Hp, Wp = H + 2 * pad, W + 2 * pad

    def _dst(slot):
        if pad == 0:
            return buf.at[slot]
        return buf.at[slot, pl.ds(pad, H), pl.ds(pad, W), :]

    def _start(real_d, slot):
        pltpu.make_async_copy(x_hbm.at[b, real_d], _dst(slot), sems.at[slot]).start()

    def _wait(slot):
        pltpu.make_async_copy(x_hbm.at[b, 0], _dst(slot), sems.at[slot]).wait()

    def _store_slab(slot, value):
        # static-index stores only (dispatch over the tiny ring when slot is traced)
        if isinstance(slot, int):
            buf[slot] = value
            return
        for ss in range(nslots):
            @pl.when(slot == ss)
            def _(ss=ss):
                buf[ss] = value

    def _normalize(slot):
        # fused InstanceNorm(+ReLU) of the previous conv, applied once when the slab arrives.
        # halo voxels are forced back to zero (PyTorch pads the normalized activation with 0).
        v = buf[slot].astype(jnp.float32)
        v = jnp.maximum(v * insc_ref[0] + insh_ref[0], 0.0)
        if pad > 0:
            r = jax.lax.broadcasted_iota(jnp.int32, (Hp, Wp, 1), 0)
            c = jax.lax.broadcasted_iota(jnp.int32, (Hp, Wp, 1), 1)
            inside = ((r >= pad) & (r < pad + H)) & ((c >= pad) & (c < pad + W))
            v = jnp.where(inside, v, 0.0)
        _store_slab(slot, v.astype(ACT_DTYPE))

    # ---- prime the ring at the first depth step of every batch element ---------------------
    @pl.when(d == 0)
    def _prime():
        buf[...] = jnp.zeros_like(buf)          # zero halos / out-of-range slots once per b
        for kd in range(k):
            rd = kd - pad                       # static
            if 0 <= rd < D:
                _start(rd, kd)
        for kd in range(k):
            rd = kd - pad
            if 0 <= rd < D:
                _wait(kd)
                if fuse_in:
                    _normalize(kd)
        if pad + 1 < D:                         # prefetch the slab needed at d == 1 (static)
            _start(pad + 1, k)

    # ---- steady state: wait for the newest slab, prefetch the next one ---------------------
    @pl.when(d > 0)
    def _arrive():
        slot = (d + k - 1) % nslots
        in_rng = (d + pad) < D

        @pl.when(in_rng)
        def _():
            _wait(slot)
            if fuse_in:
                _normalize(slot)

        @pl.when(jnp.logical_not(in_rng))
        def _():
            _store_slab(slot, jnp.zeros((Hp, Wp, Cin), ACT_DTYPE))

        nxt_slot = (d + k) % nslots

        @pl.when((d + pad + 1) < D)
        def _():
            _start(d + pad + 1, nxt_slot)

    # ---- compute: k per-depth-tap matmuls (K = k^2*Cin) accumulated in f32 -----------------
    out = jnp.zeros((H * W, Cout), jnp.float32) + b_ref[...]
    for kd in range(k):
        slot = (d + kd) % nslots
        slab = buf[slot]                                        # (Hp, Wp, Cin) bf16
        cols = [slab[kh:kh + H, kw:kw + W, :]
                for kh in range(k) for kw in range(k)]
        pat = cols[0] if len(cols) == 1 else jnp.concatenate(cols, axis=-1)
        pat = pat.reshape(H * W, k * k * Cin)
        out = out + jnp.dot(pat, w_ref[kd], preferred_element_type=jnp.float32)

    # ---- fused InstanceNorm statistics for the *following* norm (P3 accumulator) -----------
    @pl.when(d == 0)
    def _init_stats():
        sum_ref[...] = jnp.zeros_like(sum_ref)
        sq_ref[...] = jnp.zeros_like(sq_ref)

    sum_ref[...] += jnp.sum(out, axis=0).reshape(1, 1, Cout)
    sq_ref[...] += jnp.sum(out * out, axis=0).reshape(1, 1, Cout)

    # lane-dense (H, W*Cout) store
    y_ref[0, 0] = out.astype(ACT_DTYPE).reshape(H, W * Cout)


def conv3d_in(x, w, b, in_scale=None, in_shift=None):
    """'same' 3-D conv (cross-correlation, like nn.Conv3d) reading the UNPADDED input through a
    manual rolling VMEM slab ring (no pad pass, ~1x input HBM traffic).  Optionally fuses a
    per-(B, Cin) affine + ReLU onto the input (the preceding InstanceNorm) and emits the
    per-(B, Cout) sum / sum^2 of the output for the following InstanceNorm.
    x: (B, D, H, W, Cin), w: (k, k, k, Cin, Cout), b: (Cout,).
    TODO(synk): add an H-tile grid axis (and >=2 depth rows per step) for v7x-sized feature maps.
    """
    B, D, H, W, Cin = x.shape
    k = w.shape[0]
    Cout = w.shape[-1]
    pad = k // 2
    Hp, Wp = H + 2 * pad, W + 2 * pad

    fuse_in = in_scale is not None
    if in_scale is None:
        in_scale = jnp.ones((B, Cin), jnp.float32)
        in_shift = jnp.zeros((B, Cin), jnp.float32)

    x = x.astype(ACT_DTYPE)
    wmat = w.reshape(k, k * k * Cin, Cout).astype(jnp.bfloat16)
    bias = b.reshape(1, Cout).astype(jnp.float32)
    insc = in_scale.reshape(B, 1, Cin).astype(jnp.float32)
    insh = in_shift.reshape(B, 1, Cin).astype(jnp.float32)

    y, ssum, ssq = pl.pallas_call(
        functools.partial(_conv3d_kernel, k=k, D=D, H=H, W=W, Cin=Cin, Cout=Cout,
                          fuse_in=fuse_in),
        out_shape=(jax.ShapeDtypeStruct((B, D, H, W * Cout), ACT_DTYPE),
                   jax.ShapeDtypeStruct((B, 1, Cout), jnp.float32),
                   jax.ShapeDtypeStruct((B, 1, Cout), jnp.float32)),
        grid=(B, D),
        in_specs=[pl.BlockSpec(memory_space=pl.ANY),                       # x: manual DMA
                  pl.BlockSpec((1, 1, Cin), lambda bb, dd: (bb, 0, 0)),
                  pl.BlockSpec((1, 1, Cin), lambda bb, dd: (bb, 0, 0)),
                  pl.BlockSpec((k, k * k * Cin, Cout), lambda bb, dd: (0, 0, 0)),
                  pl.BlockSpec((1, Cout), lambda bb, dd: (0, 0))],
        out_specs=(pl.BlockSpec((1, 1, H, W * Cout), lambda bb, dd: (bb, dd, 0, 0)),
                   pl.BlockSpec((1, 1, Cout), lambda bb, dd: (bb, 0, 0)),
                   pl.BlockSpec((1, 1, Cout), lambda bb, dd: (bb, 0, 0))),
        scratch_shapes=[pltpu.VMEM((k + 1, Hp, Wp, Cin), ACT_DTYPE),
                        pltpu.SemaphoreType.DMA((k + 1,))],
        compiler_params=pltpu.CompilerParams(
            dimension_semantics=("parallel", "arbitrary"),
            vmem_limit_bytes=VMEM_LIMIT),
    )(x, insc, insh, wmat, bias)
    return y.reshape(B, D, H, W, Cout), ssum[:, 0, :], ssq[:, 0, :]


def instnorm_scale_shift(ssum, ssq, count):
    """Turn fused conv stats into per-(B, C) scale/shift for y -> (y - mean)/sqrt(var+eps).
    NOTE: E[y^2]-E[y]^2 in f32 can lose precision for very large volumes (flagged in review)."""
    mean = ssum / count
    var = jnp.maximum(ssq / count - mean * mean, 0.0)
    scale = jax.lax.rsqrt(var + EPS)
    return scale, -mean * scale


# ----------------------------------------------------------------------------
# Fused InstanceNorm + residual + ReLU (block epilogue), lane-dense view
# ----------------------------------------------------------------------------

def _norm2_add_relu_kernel(y_ref, sc_ref, sh_ref, r_ref, rsc_ref, rsh_ref, o_ref):
    y = y_ref[...].astype(jnp.float32) * sc_ref[...] + sh_ref[...]
    r = r_ref[...].astype(jnp.float32) * rsc_ref[...] + rsh_ref[...]
    o_ref[...] = jnp.maximum(y + r, 0.0).astype(o_ref.dtype)


def _row_tile(rows, lanes, nbig):
    """Pick a row tile so one block is ~2 MB of f32 working set per big stream."""
    cap = max(8, (2 * 1024 * 1024) // max(1, lanes * 4 * nbig))
    if rows <= cap:
        return rows
    cap -= cap % 8
    for t in range(cap, 7, -8):
        if rows % t == 0:
            return t
    return rows


def _tile_per_channel(v, rep):
    """(B, C) per-channel vector -> (B, 1, rep*C) matching the lane-dense layout."""
    B = v.shape[0]
    return jnp.tile(v.astype(jnp.float32), (1, rep)).reshape(B, 1, -1)


def norm2_add_relu(y, sc_y, sh_y, res, sc_r, sh_r):
    B, D, H, W, C = y.shape
    # lane-dense view: prefer >=128 lanes per store.
    if W * C >= 128:
        rows, lanes, rep = D * H, W * C, W
    else:
        rows, lanes, rep = D, H * W * C, H * W
    rt = _row_tile(rows, lanes, 3)
    big = pl.BlockSpec((1, rt, lanes), lambda bb, rr: (bb, rr, 0))
    small = pl.BlockSpec((1, 1, lanes), lambda bb, rr: (bb, 0, 0))
    out = pl.pallas_call(
        _norm2_add_relu_kernel,
        out_shape=jax.ShapeDtypeStruct((B, rows, lanes), ACT_DTYPE),
        grid=(B, rows // rt),
        in_specs=[big, small, small, big, small, small],
        out_specs=big,
        compiler_params=pltpu.CompilerParams(
            dimension_semantics=("parallel", "parallel"),
            vmem_limit_bytes=VMEM_LIMIT),
    )(y.reshape(B, rows, lanes),
      _tile_per_channel(sc_y, rep), _tile_per_channel(sh_y, rep),
      res.reshape(B, rows, lanes),
      _tile_per_channel(sc_r, rep), _tile_per_channel(sh_r, rep))
    return out.reshape(B, D, H, W, C)


# ----------------------------------------------------------------------------
# Small generic matmul (text heads / classifier heads) -- bf16 MXU
# ----------------------------------------------------------------------------

def _matmul_bias_kernel(a_ref, b_ref, bias_ref, o_ref):
    o_ref[...] = (jnp.dot(a_ref[...], b_ref[...],
                          preferred_element_type=jnp.float32) + bias_ref[...])


def pallas_matmul(a, b, bias=None):
    M, K = a.shape
    N = b.shape[1]
    if bias is None:
        bias = jnp.zeros((N,), jnp.float32)
    a16 = a.astype(jnp.bfloat16)
    b16 = b.astype(jnp.bfloat16)
    bias2 = bias.reshape(1, N).astype(jnp.float32)

    tm = min(M, 1024)
    n_tiles = pl.cdiv(M, tm)
    Mp = n_tiles * tm
    if Mp != M:
        a16 = jnp.pad(a16, ((0, Mp - M), (0, 0)))

    out = pl.pallas_call(
        _matmul_bias_kernel,
        out_shape=jax.ShapeDtypeStruct((Mp, N), jnp.float32),
        grid=(n_tiles,),
        in_specs=[pl.BlockSpec((tm, K), lambda i: (i, 0)),
                  pl.BlockSpec((K, N), lambda i: (0, 0)),
                  pl.BlockSpec((1, N), lambda i: (0, 0))],
        out_specs=pl.BlockSpec((tm, N), lambda i: (i, 0)),
        compiler_params=pltpu.CompilerParams(
            dimension_semantics=("parallel",), vmem_limit_bytes=VMEM_LIMIT),
    )(a16, b16, bias2)
    return out[:M]


# ----------------------------------------------------------------------------
# Fused prior <-> image bidirectional cross-attention block, tiled over S
# (two-phase grid: online-softmax prior->image, then per-tile image->prior)
# ----------------------------------------------------------------------------

def _fuse_block_kernel(f_ref, pr_ref, wf_ref, wq1_ref, wkv2_ref, fo_ref, po_ref,
                       m_sc, l_sc, acc_sc, q1_sc, prn_sc, *, C, scale):
    ph = pl.program_id(1)
    s = pl.program_id(2)
    nS = pl.num_programs(2)
    f = f_ref[0]                                                 # (tS, C) bf16

    @pl.when(ph == 0)
    def _phase0():
        @pl.when(s == 0)
        def _():
            m_sc[...] = jnp.full_like(m_sc, -jnp.inf)
            l_sc[...] = jnp.zeros_like(l_sc)
            acc_sc[...] = jnp.zeros_like(acc_sc)
            q1_sc[...] = jnp.dot(pr_ref[0].astype(jnp.bfloat16), wq1_ref[...],
                                 preferred_element_type=jnp.float32)

        # fused K1 | V1 projection of this S tile (bf16 for downstream matmuls)
        fproj = jnp.dot(f, wf_ref[:, :2 * C], preferred_element_type=jnp.float32)
        k1 = fproj[:, :C].astype(jnp.bfloat16)
        v1 = fproj[:, C:].astype(jnp.bfloat16)

        s1 = _dot_nt(q1_sc[...], k1) * scale                     # (L, tS)
        m_new = jnp.maximum(m_sc[...], jnp.max(s1, axis=-1, keepdims=True))
        alpha = jnp.exp(m_sc[...] - m_new)
        p = jnp.exp(s1 - m_new)
        l_sc[...] = alpha * l_sc[...] + jnp.sum(p, axis=-1, keepdims=True)
        acc_sc[...] = alpha * acc_sc[...] + jnp.dot(p.astype(jnp.bfloat16), v1,
                                                    preferred_element_type=jnp.float32)
        m_sc[...] = m_new
        fo_ref[0] = f                                            # overwritten in phase 1

        @pl.when(s == nS - 1)
        def _finish():
            pr_new = pr_ref[0] + acc_sc[...] * pl.reciprocal(l_sc[...], approx=True)
            prn_sc[...] = pr_new
            po_ref[0] = pr_new

    @pl.when(ph == 1)
    def _phase1():
        q2 = jnp.dot(f, wf_ref[:, 2 * C:3 * C], preferred_element_type=jnp.float32)
        kv2 = jnp.dot(prn_sc[...].astype(jnp.bfloat16), wkv2_ref[...],
                      preferred_element_type=jnp.float32)        # (L, 2C)
        k2 = kv2[:, :C].astype(jnp.bfloat16)
        v2 = kv2[:, C:].astype(jnp.bfloat16)
        s2 = _dot_nt(q2, k2) * scale                             # (tS, L)
        e2 = jnp.exp(s2 - jnp.max(s2, axis=-1, keepdims=True))
        p2 = e2 * pl.reciprocal(jnp.sum(e2, axis=-1, keepdims=True), approx=True)
        o2 = jnp.dot(p2.astype(jnp.bfloat16), v2, preferred_element_type=jnp.float32)
        fo_ref[0] = (f.astype(jnp.float32) + o2).astype(fo_ref.dtype)


def _seq_tile(S, cap=1024):
    if S <= cap:
        return S
    for t in range(cap, 127, -128):
        if S % t == 0:
            return t
    return S


def fuse_block(f, priors, blk):
    B, S, C = f.shape
    L = priors.shape[1]
    tS = _seq_tile(S)
    nS = S // tS
    return pl.pallas_call(
        functools.partial(_fuse_block_kernel, C=C, scale=1.0 / math.sqrt(C)),
        out_shape=(jax.ShapeDtypeStruct((B, S, C), ACT_DTYPE),
                   jax.ShapeDtypeStruct((B, L, C), jnp.float32)),
        grid=(B, 2, nS),
        in_specs=[pl.BlockSpec((1, tS, C), lambda bb, ph, ss: (bb, ss, 0)),
                  pl.BlockSpec((1, L, C), lambda bb, ph, ss: (bb, 0, 0)),
                  pl.BlockSpec((C, 3 * C), lambda bb, ph, ss: (0, 0)),
                  pl.BlockSpec((C, C), lambda bb, ph, ss: (0, 0)),
                  pl.BlockSpec((C, 2 * C), lambda bb, ph, ss: (0, 0))],
        out_specs=(pl.BlockSpec((1, tS, C), lambda bb, ph, ss: (bb, ss, 0)),
                   pl.BlockSpec((1, L, C), lambda bb, ph, ss: (bb, 0, 0))),
        scratch_shapes=[pltpu.VMEM((L, 1), jnp.float32),      # m
                        pltpu.VMEM((L, 1), jnp.float32),      # l
                        pltpu.VMEM((L, C), jnp.float32),      # acc
                        pltpu.VMEM((L, C), jnp.float32),      # q1
                        pltpu.VMEM((L, C), jnp.float32)],     # pr_new
        compiler_params=pltpu.CompilerParams(
            dimension_semantics=("parallel", "arbitrary", "arbitrary"),
            vmem_limit_bytes=VMEM_LIMIT),
    )(f.astype(ACT_DTYPE), priors.astype(jnp.float32),
      blk['wf'], blk['wq1'], blk['wkv2'])


# ----------------------------------------------------------------------------
# Dynamic classifier kernel (transposed, lane-dense output)
# ----------------------------------------------------------------------------

def _dynamic_seg_kernel(f_ref, k_ref, o_ref):
    o_ref[0] = _dot_nt(k_ref[0], f_ref[0])       # (T, S): spatial axis on lanes


def dynamic_seg_t(feat, kernels):
    B, S, C = feat.shape
    T = kernels.shape[1]
    return pl.pallas_call(
        _dynamic_seg_kernel,
        out_shape=jax.ShapeDtypeStruct((B, T, S), jnp.float32),
        grid=(B,),
        in_specs=[pl.BlockSpec((1, S, C), lambda bb: (bb, 0, 0)),
                  pl.BlockSpec((1, T, C), lambda bb: (bb, 0, 0))],
        out_specs=pl.BlockSpec((1, T, S), lambda bb: (bb, 0, 0)),
        compiler_params=pltpu.CompilerParams(
            dimension_semantics=("parallel",), vmem_limit_bytes=VMEM_LIMIT),
    )(feat.astype(ACT_DTYPE), kernels.astype(jnp.float32))


# ----------------------------------------------------------------------------
# Building blocks (glue in JAX, compute in Pallas)
# ----------------------------------------------------------------------------

def maxpool3d(x, s=2):
    # TODO(synk): pooling kept as XLA glue; could be folded into the next conv's slab DMA.
    B, D, H, W, C = x.shape
    return x.reshape(B, D // s, s, H // s, s, W // s, s, C).max(axis=(2, 4, 6))


def upsample_nearest3d(x, s=2):
    # TODO(synk): reference up_block may use trilinear interpolation; nearest used here.  The
    # upsample + channel-concat could be folded into the first conv of up_block (index //2).
    B, D, H, W, C = x.shape
    x = jnp.broadcast_to(x[:, :, None, :, None, :, None, :],
                         (B, D, s, H, s, W, s, C))
    return x.reshape(B, D * s, H * s, W * s, C)


def run_basic_block(x, p):
    """BasicBlock: conv-IN-ReLU-conv-IN (+ optional 1x1x1 conv-IN shortcut) + residual ReLU.
    The IN+ReLU between the two convs is fused into the second conv's slab path (no standalone
    elementwise pass); IN statistics come fused out of every conv."""
    B, D, H, W, _ = x.shape
    S = float(D * H * W)
    y1, s1, q1 = conv3d_in(x, p['conv1']['w'], p['conv1']['b'])
    sc1, sh1 = instnorm_scale_shift(s1, q1, S)
    y2, s2, q2 = conv3d_in(y1, p['conv2']['w'], p['conv2']['b'],
                           in_scale=sc1, in_shift=sh1)
    sc2, sh2 = instnorm_scale_shift(s2, q2, S)
    if p['shortcut'] is not None:
        ys, ss, qs = conv3d_in(x, p['shortcut']['w'], p['shortcut']['b'])
        scs, shs = instnorm_scale_shift(ss, qs, S)
        return norm2_add_relu(y2, sc2, sh2, ys, scs, shs)
    Cc = y2.shape[-1]
    ident = jnp.ones((B, Cc), jnp.float32)
    zero = jnp.zeros((B, Cc), jnp.float32)
    return norm2_add_relu(y2, sc2, sh2, x, ident, zero)


def run_inconv(x, p):
    # TODO(synk): inconv composition assumed (plain conv followed by one BasicBlock).
    y, _, _ = conv3d_in(x, p['conv0']['w'], p['conv0']['b'])
    return run_basic_block(y, p['block'])


def run_down(x, p):
    y = maxpool3d(x, 2)
    for bp in p['blocks']:
        y = run_basic_block(y, bp)
    return y


def run_up(x_low, x_skip, p):
    up = upsample_nearest3d(x_low, 2)
    y = jnp.concatenate([x_skip, up], axis=-1)
    for bp in p['blocks']:
        y = run_basic_block(y, bp)
    return y


def run_prior_fuse(x, tgt_idx, mod_idx, text_prior, p):
    """PriorInitFusionLayer: gather task / modality prior tokens, append text priors, then
    block_num fused bidirectional single-head cross-attention blocks between priors and the
    flattened feature tokens.
    TODO(synk): exact Hermes PriorInitFusionLayer internals (MHSA/FFN details) approximated."""
    B, D, H, W, C = x.shape
    task_p = p['task_prior'][tgt_idx]                   # (B, tn_sel, C)
    mod_p = p['mod_prior'][mod_idx]                     # (B, mn_sel, C)
    priors = jnp.concatenate([task_p, mod_p, text_prior], axis=1).astype(jnp.float32)
    f = x.reshape(B, D * H * W, C).astype(ACT_DTYPE)
    for blk in p['blocks']:
        f, priors = fuse_block(f, priors, blk)
    return f.reshape(B, D, H, W, C), priors


def hierarchy_prior_classifier(out_feat, task_priors, p):
    """Dynamic classifier: per-task 1x1x1 kernels produced from concatenated task priors."""
    B, D, H, W, C = out_feat.shape
    cat = jnp.concatenate(task_priors, axis=-1)          # (B, T, 34*base_ch)
    T = cat.shape[1]
    kernels = pallas_matmul(cat.reshape(B * T, cat.shape[-1]), p['w'], p['b'])
    kernels = kernels.reshape(B, T, C)
    feat = out_feat.reshape(B, D * H * W, C)
    seg = dynamic_seg_t(feat, kernels)                   # (B, T, S), lane-dense
    return seg.reshape(B, T, D, H, W)


def modality_classifier(mod_priors, p):
    # TODO(synk): ModalityClassifier internals assumed (linear head + token mean pooling).
    cat = jnp.concatenate(mod_priors, axis=-1)           # (B, M, 34*base_ch)
    B, M, C = cat.shape
    logits = pallas_matmul(cat.reshape(B * M, C), p['w'], p['b']).reshape(B, M, -1)
    return jnp.mean(logits, axis=1)                      # (B, mn)


# ----------------------------------------------------------------------------
# Parameter construction (deterministic, synthetic)
# ----------------------------------------------------------------------------

class ParamGen:
    def __init__(self, seed=0):
        self.key = jax.random.PRNGKey(seed)

    def next(self, shape, scale):
        self.key, sub = jax.random.split(self.key)
        return (jax.random.normal(sub, shape, jnp.float32) * scale).astype(jnp.float32)


def make_conv(pg, cin, cout, k=3):
    return {'w': pg.next((k, k, k, cin, cout), 1.0 / math.sqrt(k * k * k * cin)),
            'b': jnp.zeros((cout,), jnp.float32)}


def make_block(pg, cin, cout, k=3):
    return {'conv1': make_conv(pg, cin, cout, k),
            'conv2': make_conv(pg, cout, cout, k),
            'shortcut': make_conv(pg, cin, cout, 1) if cin != cout else None}


def make_linear(pg, fin, fout):
    return {'w': pg.next((fin, fout), 1.0 / math.sqrt(fin)),
            'b': jnp.zeros((fout,), jnp.float32)}


def make_prior_fuse(pg, c, block_num, tn, mn):
    blocks = []
    for _ in range(block_num):
        w = {name: pg.next((c, c), 1.0 / math.sqrt(c))
             for name in ('wq1', 'wk1', 'wv1', 'wq2', 'wk2', 'wv2')}
        # pre-concatenate the fused projection weights once at init time (review item)
        blocks.append({
            'wq1': w['wq1'].astype(jnp.bfloat16),
            'wf': jnp.concatenate([w['wk1'], w['wv1'], w['wq2']], axis=1).astype(jnp.bfloat16),
            'wkv2': jnp.concatenate([w['wk2'], w['wv2']], axis=1).astype(jnp.bfloat16),
        })
    return {'task_prior': pg.next((tn, c), 0.02),
            'mod_prior': pg.next((mn, c), 0.02),
            'blocks': blocks}


def init_hermes_params(pg, in_ch, base_ch, tn, mn, embed_dim, text_prior_num):
    bc = base_ch

    def make_down(cin, cout, nb):
        return {'blocks': [make_block(pg, cin, cout)]
                + [make_block(pg, cout, cout) for _ in range(nb - 1)]}

    def make_up(cin, cout, nb):
        return {'blocks': [make_block(pg, cin + cout, cout)]
                + [make_block(pg, cout, cout) for _ in range(nb - 1)]}

    params = {
        'inc': {'conv0': make_conv(pg, in_ch, bc), 'block': make_block(pg, bc, bc)},
        'down1': make_down(bc, 2 * bc, 2),
        'down2': make_down(2 * bc, 4 * bc, 2),
        'down3': make_down(4 * bc, 8 * bc, 2),
        'down4': make_down(8 * bc, 10 * bc, 2),
        'fuse2': make_prior_fuse(pg, 4 * bc, 2, tn, mn),
        'fuse3': make_prior_fuse(pg, 8 * bc, 2, tn, mn),
        'fuse4': make_prior_fuse(pg, 10 * bc, 4, tn, mn),
        'fuse5': make_prior_fuse(pg, 8 * bc, 2, tn, mn),
        'fuse6': make_prior_fuse(pg, 4 * bc, 2, tn, mn),
        'up1': make_up(10 * bc, 8 * bc, 2),
        'up2': make_up(8 * bc, 4 * bc, 2),
        'up3': make_up(4 * bc, 2 * bc, 2),
        'up4': make_up(2 * bc, bc, 2),
    }
    prior_dims = [4 * bc, 8 * bc, 10 * bc, 8 * bc, 4 * bc]
    params['text_heads'] = [make_linear(pg, embed_dim, text_prior_num * pd) for pd in prior_dims]
    params['out'] = make_linear(pg, 34 * bc, bc)
    params['mod_out'] = make_linear(pg, 34 * bc, mn)
    return params


# ----------------------------------------------------------------------------
# Full forward pass (mirrors Hermes_UNet.forward)
# ----------------------------------------------------------------------------

def hermes_forward(params, x, tgt_idx, mod_idx, raw_text_embeds, base_ch, text_prior_num):
    # PyTorch NCDHW -> channels-last (B, D, H, W, C); feature maps flow as bf16.
    x = jnp.transpose(x, (0, 2, 3, 4, 1)).astype(ACT_DTYPE)
    B = raw_text_embeds.shape[0]
    bc = base_ch
    tn_sel = tgt_idx.shape[1]
    mn_sel = mod_idx.shape[1]

    prior_dims = [4 * bc, 8 * bc, 10 * bc, 8 * bc, 4 * bc]
    text_priors = []
    for head, pd in zip(params['text_heads'], prior_dims):
        flat = pallas_matmul(raw_text_embeds, head['w'], head['b'])
        text_priors.append(flat.reshape(B, text_prior_num, pd))

    x1 = run_inconv(x, params['inc'])
    x2 = run_down(x1, params['down1'])
    x3 = run_down(x2, params['down2'])
    x3, priors_2 = run_prior_fuse(x3, tgt_idx, mod_idx, text_priors[0], params['fuse2'])
    x4 = run_down(x3, params['down3'])
    x4, priors_3 = run_prior_fuse(x4, tgt_idx, mod_idx, text_priors[1], params['fuse3'])
    x5 = run_down(x4, params['down4'])
    x5, priors_4 = run_prior_fuse(x5, tgt_idx, mod_idx, text_priors[2], params['fuse4'])

    out = run_up(x5, x4, params['up1'])
    out, priors_5 = run_prior_fuse(out, tgt_idx, mod_idx, text_priors[3], params['fuse5'])
    out = run_up(out, x3, params['up2'])
    out, priors_6 = run_prior_fuse(out, tgt_idx, mod_idx, text_priors[4], params['fuse6'])
    out = run_up(out, x2, params['up3'])
    out = run_up(out, x1, params['up4'])

    all_priors = [priors_2, priors_3, priors_4, priors_5, priors_6]
    task_priors = [p[:, :tn_sel, :] for p in all_priors]
    seg_out = hierarchy_prior_classifier(out, task_priors, params['out'])
    mod_priors = [p[:, tn_sel:tn_sel + mn_sel, :] for p in all_priors]
    mod_out = modality_classifier(mod_priors, params['mod_out'])
    return seg_out.astype(jnp.float32), mod_out.astype(jnp.float32)


# ----------------------------------------------------------------------------
# Main
# ----------------------------------------------------------------------------

if __name__ == "__main__":
    IN_CH, BASE_CH = 1, 4
    B, D, H, W = 2, 16, 16, 16          # 4 pooling stages: 16 -> 8 -> 4 -> 2 -> 1
    TN, MN = 72, 6                      # prior pools (task / modality)
    EMBED_DIM = 128                     # text embedding dim (constructor arg, small for demo)
    TEXT_PRIOR_NUM = 4
    TGT_SEL, MOD_SEL = 3, 1             # tasks / modalities selected per sample

    pg = ParamGen(0)
    params = init_hermes_params(pg, IN_CH, BASE_CH, TN, MN, EMBED_DIM, TEXT_PRIOR_NUM)

    key = jax.random.PRNGKey(0)
    kx, kt, km, ke = jax.random.split(key, 4)
    x = jax.random.normal(kx, (B, IN_CH, D, H, W), jnp.float32)
    tgt_idx = jax.random.randint(kt, (B, TGT_SEL), 0, TN)
    mod_idx = jax.random.randint(km, (B, MOD_SEL), 0, MN)
    raw_text_embeds = jax.random.normal(ke, (B, EMBED_DIM), jnp.float32)

    seg_out, mod_out = hermes_forward(params, x, tgt_idx, mod_idx, raw_text_embeds,
                                      BASE_CH, TEXT_PRIOR_NUM)
    jax.block_until_ready((seg_out, mod_out))

    assert seg_out.shape == (B, TGT_SEL, D, H, W), seg_out.shape
    assert mod_out.shape == (B, MN), mod_out.shape
    assert bool(jnp.all(jnp.isfinite(seg_out))) and bool(jnp.all(jnp.isfinite(mod_out)))
    print("KERNEL_OK")
</pallas_src>

<mosaic_0001>
module attributes {stable_mosaic.version = 11 : i64} {
  func.func @_matmul_bias_kernel(%arg0: i32, %arg1: memref<2x128xbf16, #tpu.memory_space<vmem>>, %arg2: memref<128x64xbf16, #tpu.memory_space<vmem>>, %arg3: memref<1x64xf32, #tpu.memory_space<vmem>>, %arg4: memref<2x64xf32, #tpu.memory_space<vmem>>) attributes {dimension_semantics = [#tpu.dimension_semantics<parallel>], iteration_bounds = array<i64: 1>, scalar_prefetch = 0 : i64, scratch_operands = 0 : i64, tpu.core_type = #tpu.core_type<tc>, window_params = [{transform_indices = @transform_0, window_bounds = array<i64: 2, 128>}, {pipeline_mode = #tpu.pipeline_mode<synchronous>, transform_indices = @transform_1, window_bounds = array<i64: 128, 64>}, {pipeline_mode = #tpu.pipeline_mode<synchronous>, transform_indices = @transform_2, window_bounds = array<i64: 1, 64>}, {transform_indices = @transform_3, window_bounds = array<i64: 2, 64>}]} {
    %c0 = arith.constant 0 : index
    %c0_0 = arith.constant 0 : index
    %0 = vector.load %arg1[%c0, %c0_0] : memref<2x128xbf16, #tpu.memory_space<vmem>>, vector<2x128xbf16>
    %c0_1 = arith.constant 0 : index
    %c0_2 = arith.constant 0 : index
    %1 = vector.load %arg2[%c0_1, %c0_2] : memref<128x64xbf16, #tpu.memory_space<vmem>>, vector<128x64xbf16>
    %cst = arith.constant dense<0.000000e+00> : vector<2x64xf32>
    %2 = tpu.matmul %0, %1, %cst {dimension_numbers = #tpu.dot_dimension_numbers<[1], [0], [0], [1], [0, 0, 1, 1], [], []>} : vector<2x128xbf16>, vector<128x64xbf16>, vector<2x64xf32> -> vector<2x64xf32>
    %c0_3 = arith.constant 0 : index
    %c0_4 = arith.constant 0 : index
    %3 = vector.load %arg3[%c0_3, %c0_4] : memref<1x64xf32, #tpu.memory_space<vmem>>, vector<1x64xf32>
    %4 = vector.broadcast %3 : vector<1x64xf32> to vector<2x64xf32>
    %5 = arith.addf %2, %4 : vector<2x64xf32>
    %c0_5 = arith.constant 0 : index
    %c0_6 = arith.constant 0 : index
    %6 = vector.load %arg4[%c0_5, %c0_6] : memref<2x64xf32, #tpu.memory_space<vmem>>, vector<2x64xf32>
    tpu.vector_store %arg4[%c0_5, %c0_6], %5 {strides = array<i32>} : memref<2x64xf32, #tpu.memory_space<vmem>>, vector<2x64xf32>,
    return
  }
  func.func @transform_0(%arg0: i32) -> (i32, i32) {
    %c0_i32 = arith.constant 0 : i32
    %c0_i32_0 = arith.constant 0 : i32
    return %arg0, %c0_i32 : i32, i32
  }
  func.func @transform_1(%arg0: i32) -> (i32, i32) {
    %c0_i32 = arith.constant 0 : i32
    %c0_i32_0 = arith.constant 0 : i32
    %c0_i32_1 = arith.constant 0 : i32
    return %c0_i32, %c0_i32_0 : i32, i32
  }
  func.func @transform_2(%arg0: i32) -> (i32, i32) {
    %c0_i32 = arith.constant 0 : i32
    %c0_i32_0 = arith.constant 0 : i32
    %c0_i32_1 = arith.constant 0 : i32
    return %c0_i32, %c0_i32_0 : i32, i32
  }
  func.func @transform_3(%arg0: i32) -> (i32, i32) {
    %c0_i32 = arith.constant 0 : i32
    %c0_i32_0 = arith.constant 0 : i32
    return %arg0, %c0_i32 : i32, i32
  }
}

</mosaic_0001>

<llo_original>
// kernel: tpu_custom_call.1
$region0: #{tpu_custom_call.1}
  #allocation0 [shape = 'u32[]', space=smem, size = 0x4, offset = 0x4, fixed_abs, tag = 'smem constant byte address 0x4 - core index']
  #allocation1 [shape = 'u32[144,128]{1,0:T(1,128)}', space=vmem, size = 0x12000, scoped, tag = 'internal scratch']
  %s0 = inlined_call_operand.vmem [shape: bf16[2,128], index: 0, kind: input, shape index: {}]
  %s1 = inlined_call_operand.vmem [shape: bf16[128,64], index: 1, kind: input, shape index: {}]
  %s2 = inlined_call_operand.vmem [shape: f32[1,64], index: 2, kind: input, shape index: {}]
  %s3 = inlined_call_operand.hbm [shape: f32[2,64], index: 3, kind: output, shape index: {}]
  %s4 = sld [smem:[#allocation0]]
  $region22: #{tpu_custom_call.1} parent=0
    _
  %s6 = ssub.s32 1, %s4
  %s7 = scalar_select 0, %s6, %s4
  $region1: #{tpu_custom_call.1} parent=0
    #allocation2 [shape = 'u8[1024]{0}', space=vmem, size = 0x400, scoped, tag = 'output window, operand 0, single buffered']
    #allocation3 [shape = 's32[1]{0}', space=sflag, size = 0x4, scoped, tag = 'scoped memory for tpu_custom_call.1']
    %8 = vsyncpa [#allocation3], 0
    // Predicated region
    $region2: #{tpu_custom_call.1} parent=1 // pred_check
      _
    $region3: #{tpu_custom_call.1} parent=1 // pred_check_branch
      %10 = sbr.rel (0) target = $region5
    $region4: #{tpu_custom_call.1} parent=1 // pred_region
      _
    $region5: #{tpu_custom_call.1} parent=1 // pred_fallthru
      _
    // Predicated region
    $region6: #{tpu_custom_call.1} parent=1 // pred_check
      _
    $region7: #{tpu_custom_call.1} parent=1 // pred_check_branch
      %12 = sbr.rel (0) target = $region9
    $region8: #{tpu_custom_call.1} parent=1 // pred_region
      _
    $region9: #{tpu_custom_call.1} parent=1 // pred_fallthru
      _
    // Predicated region
    $region10: #{tpu_custom_call.1} parent=1 // pred_check
      _
    $region11: #{tpu_custom_call.1} parent=1 // pred_check_branch
      %14 = sbr.rel (0) target = $region13
    $region12: #{tpu_custom_call.1} parent=1 // pred_region
      _
    $region13: #{tpu_custom_call.1} parent=1 // pred_fallthru
      _
    %v16 = vld [vmem:[%s0] sm:$0x1]
    %v17 = vld [vmem:[%s1] sm:$0xf]
    %v18 = vld [vmem:[%s1 + $0x4] sm:$0xf]
    %v19 = vld [vmem:[%s1 + $0x8] sm:$0xf]
    %v20 = vld [vmem:[%s1 + $0xc] sm:$0xf]
    %v21 = vld [vmem:[%s1 + $0x10] sm:$0xf]
    %v22 = vld [vmem:[%s1 + $0x14] sm:$0xf]
    %v23 = vld [vmem:[%s1 + $0x18] sm:$0xf]
    %v24 = vld [vmem:[%s1 + $0x1c] sm:$0xf]
    %v25 = vld [vmem:[%s1 + $0x20] sm:$0xf]
    %v26 = vld [vmem:[%s1 + $0x24] sm:$0xf]
    %v27 = vld [vmem:[%s1 + $0x28] sm:$0xf]
    %v28 = vld [vmem:[%s1 + $0x2c] sm:$0xf]
    %v29 = vld [vmem:[%s1 + $0x30] sm:$0xf]
    %v30 = vld [vmem:[%s1 + $0x34] sm:$0xf]
    %v31 = vld [vmem:[%s1 + $0x38] sm:$0xf]
    %v32 = vld [vmem:[%s1 + $0x3c] sm:$0xf]
    %v33 = vld [vmem:[%s2] sm:$0x1]
    %v35 = vlaneseq
    %v36 = vshrl.u32 %v35, 7
    %v37 = vsub.s32 0, %v36
    %v38 = vrot.slane %v33, %v37
    %v56 = vunpack.c.l.b16 %v17
    %v57 = vunpack.c.l.b16 %v18
    %v58 = vunpack.c.l.b16 %v19
    %v59 = vunpack.c.l.b16 %v20
    %v60 = vunpack.c.l.b16 %v21
    %v61 = vunpack.c.l.b16 %v22
    %v62 = vunpack.c.l.b16 %v23
    %v63 = vunpack.c.l.b16 %v24
    %v64 = vunpack.c.l.b16 %v25
    %v65 = vunpack.c.l.b16 %v26
    %v66 = vunpack.c.l.b16 %v27
    %v67 = vunpack.c.l.b16 %v28
    %v68 = vunpack.c.l.b16 %v29
    %v69 = vunpack.c.l.b16 %v30
    %v70 = vunpack.c.l.b16 %v31
    %v71 = vunpack.c.l.b16 %v32
    %v72 = vpack.c.b16 %v57, %v56
    %v73 = vpack.c.b16 %v59, %v58
    %v74 = vpack.c.b16 %v61, %v60
    %v75 = vpack.c.b16 %v63, %v62
    %v76 = vpack.c.b16 %v65, %v64
    %v77 = vpack.c.b16 %v67, %v66
    %v78 = vpack.c.b16 %v69, %v68
    %v79 = vpack.c.b16 %v71, %v70
    %88 = vmatprep.subr.bf16.mxu0 0
    %89 = vmatpush1.bf16.msra.mxu0 %v72
    %90 = vmatprep.subr.bf16.mxu0 0
    %91 = vmatpush1.bf16.msra.mxu0 %v73
    %92 = vmatprep.subr.bf16.mxu0 0
    %93 = vmatpush1.bf16.msra.mxu0 %v74
    %94 = vmatprep.subr.bf16.mxu0 0
    %95 = vmatpush1.bf16.msra.mxu0 %v75
    %96 = vmatprep.subr.bf16.mxu0 0
    %97 = vmatpush1.bf16.msra.mxu0 %v76
    %98 = vmatprep.subr.bf16.mxu0 0
    %99 = vmatpush1.bf16.msra.mxu0 %v77
    %100 = vmatprep.subr.bf16.mxu0 0
    %101 = vmatpush1.bf16.msra.mxu0 %v78
    %102 = vmatprep.subr.bf16.mxu0 0
    %103 = vmatpush1.bf16.msra.mxu0 %v79
    %104 = vmatprep.subr.bf16.mxu0 0
    %105 = vmatpush1.bf16.msra.mxu0 0
    %106 = vmatprep.subr.bf16.mxu0 0
    %107 = vmatpush1.bf16.msra.mxu0 0
    %108 = vmatprep.subr.bf16.mxu0 0
    %109 = vmatpush1.bf16.msra.mxu0 0
    %110 = vmatprep.subr.bf16.mxu0 0
    %111 = vmatpush1.bf16.msra.mxu0 0
    %112 = vmatprep.subr.bf16.mxu0 0
    %113 = vmatpush1.bf16.msra.mxu0 0
    %114 = vmatprep.subr.bf16.mxu0 0
    %115 = vmatpush1.bf16.msra.mxu0 0
    %116 = vmatprep.subr.bf16.mxu0 0
    %117 = vmatpush1.bf16.msra.mxu0 0
    %118 = vmatprep.subr.bf16.mxu0 0
    %119 = vmatpush1.bf16.msra.mxu0 0
    %120 = vmatprep.mubr.bf16.mxu0 0
    %121 = vmatmul.mubr.bf16.gmra.mrb[0].mxu0 %v16
    %v122 = vpop.f32.mrb[0].mxu0
    %v123 = vadd.f32 %v38, %v122
    %v124 = vpop.f32.mrb[0].mxu0
    %v125 = vpop.f32.mrb[0].mxu0
    %v126 = vpop.f32.mrb[0].mxu0
    %127 = vdwg.mxu0
    %vm128 = vcmask 517120
    %129 = vst.msk [vmem:[#allocation2] sm:$0x3] %vm128, %v123
    // Predicated region
    $region14: #{tpu_custom_call.1} parent=1 // pred_check
      _
    $region15: #{tpu_custom_call.1} parent=1 // pred_check_branch
      %131 = sbr.rel (0) target = $region17
    $region16: #{tpu_custom_call.1} parent=1 // pred_region
      %s133 = ssub.s32 32, 32
      %134 = vsyncadd [#allocation3], %s133
      %s136 = sshll.u32 [#allocation2], 4
      %s137 = int_to_ptr.vmem [resolvable:$true] %s136
      %139 = dma.vmem_to_hbm [thread:$0]  %s137, 32, %s3, [#allocation3]
    $region17: #{tpu_custom_call.1} parent=1 // pred_fallthru
      _
    // Predicated region
    $region18: #{tpu_custom_call.1} parent=1 // pred_check
      _
    $region19: #{tpu_custom_call.1} parent=1 // pred_check_branch
      %141 = sbr.rel (0) target = $region21
    $region20: #{tpu_custom_call.1} parent=1 // pred_region
      %142 = dma.done [#allocation3], 32
    $region21: #{tpu_custom_call.1} parent=1 // pred_fallthru
      _
    %143 = vsyncpa [#allocation3], 1

</llo_original>
